<compile_context>
chip_gen: v6e
topology: v6e:2x2x1
jax: 0.10.0
libtpu: 0.0.40
codegen_flags: <defaults>
</compile_context>

<pallas_src>
import functools

import jax
import jax.numpy as jnp
from jax import lax
from jax.experimental import pallas as pl
from jax.experimental.pallas import tpu as pltpu

TEMPERATURE = 10.0

# Conservative count of full-tile f32 temporaries the kernel body materializes
# (p, s, shifted, exp, log_p/log_q, elem).
_TEMP_F32_ARRAYS = 6


def _kd_kernel(pred_ref, soft_ref, out_ref, *, temperature):
    """One (block_rows, C) tile -> one lane-dense (8, 128) partial-sum block."""
    inv_t = jnp.float32(1.0 / temperature)
    p = pred_ref[...].astype(jnp.float32) * inv_t
    s = soft_ref[...].astype(jnp.float32) * inv_t

    # log_softmax(pred / T) along the class (lane) dim.
    p_shift = p - jnp.max(p, axis=-1, keepdims=True)
    log_zp = jnp.log(jnp.sum(jnp.exp(p_shift), axis=-1, keepdims=True))
    log_p = p_shift - log_zp

    # softmax(soft / T): single exp pass reused for q and its normalizer.
    s_shift = s - jnp.max(s, axis=-1, keepdims=True)
    es = jnp.exp(s_shift)
    zs = jnp.sum(es, axis=-1, keepdims=True)
    q = es * (1.0 / zs)                  # exact per-row reciprocal (1e-5 accuracy)
    log_q = s_shift - jnp.log(zs)

    # Element-wise KLDivLoss contribution for this tile.
    elem = q * (log_q - log_p)           # (block_rows, C)

    # Partial reduction: rows (sublane axis) first, then fold 128-lane groups
    # with static lane-aligned slices.  The single cross-lane collapse happens
    # once, in the JAX wrapper.
    col = jnp.sum(elem, axis=0, keepdims=True)        # (1, C)
    c = col.shape[-1]
    if c % 128 == 0:
        part = col[:, 0:128]
        for g in range(1, c // 128):
            part = part + col[:, g * 128:(g + 1) * 128]   # (1, 128)
    else:
        # Non-lane-aligned class count: collapse to a scalar, park it in lane 0.
        lane = lax.broadcasted_iota(jnp.int32, (1, 128), 1)
        part = jnp.where(lane == 0, jnp.sum(col), jnp.float32(0.0))

    # Lane-dense, unmasked (8, 128) store; every sublane holds the tile total,
    # the wrapper divides the grand sum by 8.
    out_ref[...] = jnp.broadcast_to(part, (8, 128))


def _round_down(x, m):
    return (x // m) * m


def _vmem_budget_bytes():
    """Generation-aware VMEM budget (v7x: 64 MiB/TC, v5e/v6e: 128 MiB)."""
    try:
        cap = pltpu.get_tpu_info().vmem_capacity_bytes
    except Exception:  # pragma: no cover - conservative fallback
        cap = 64 * 1024 * 1024
    # Leave headroom for Mosaic internal scratch / output buffers.
    return min((cap * 3) // 4, 64 * 1024 * 1024)


def _pick_block_rows(n, c, in_itemsize, vmem_budget_bytes, max_rows=2048):
    """Largest row tile that (a) fits inputs (2 arrays x 2 pipeline buffers) plus
    in-kernel f32 temporaries under the VMEM budget and (b) leaves >= 4 grid
    steps so megacore sharding + DMA/compute overlap stay active."""
    bytes_per_row = c * (2 * 2 * in_itemsize + _TEMP_F32_ARRAYS * 4)
    cap = max(8, _round_down(vmem_budget_bytes // bytes_per_row, 8))
    cap = min(cap, max_rows)
    quarter = max(8, _round_down(pl.cdiv(n, 4), 8))
    return max(8, min(cap, quarter))


def criterion_kd(pred, soft, temperature=TEMPERATURE, block_rows=None):
    """KL-div KD loss, scalar result. pred/soft: (N, C) logits (f32 or bf16)."""
    n, c = pred.shape
    assert soft.shape == (n, c)

    in_itemsize = jnp.dtype(pred.dtype).itemsize
    vmem_budget = _vmem_budget_bytes()
    if block_rows is None:
        block_rows = _pick_block_rows(n, c, in_itemsize, vmem_budget)
    # Row tiles must be sublane-aligned.
    block_rows = max(8, _round_down(int(block_rows), 8))

    # Ragged N: pad both inputs with identical rows (contribute exactly 0 to
    # the loss since q*(log q - log p) == 0 when pred_row == soft_row).
    n_pad = pl.cdiv(n, block_rows) * block_rows
    if n_pad != n:
        pad = n_pad - n
        pred = jnp.concatenate([pred, jnp.zeros((pad, c), pred.dtype)], axis=0)
        soft = jnp.concatenate([soft, jnp.zeros((pad, c), soft.dtype)], axis=0)
    n_blocks = n_pad // block_rows

    kernel = functools.partial(_kd_kernel, temperature=float(temperature))

    # TODO(synk): for vocab-scale C where even one 8-row tile overflows VMEM,
    # add a class-dim grid axis with online-softmax accumulation.
    partials = pl.pallas_call(
        kernel,
        out_shape=jax.ShapeDtypeStruct((n_blocks * 8, 128), jnp.float32),
        grid_spec=pltpu.PrefetchScalarGridSpec(
            num_scalar_prefetch=0,
            grid=(n_blocks,),
            in_specs=[
                pl.BlockSpec((block_rows, c), lambda i: (i, 0)),
                pl.BlockSpec((block_rows, c), lambda i: (i, 0)),
            ],
            out_specs=pl.BlockSpec((8, 128), lambda i: (i, 0)),
        ),
        compiler_params=pltpu.CompilerParams(
            dimension_semantics=("parallel",),   # per-block partials: race-free
            vmem_limit_bytes=int(vmem_budget),
        ),
    )(pred, soft)

    # Each grid step replicated its partial across 8 sublanes -> divide by 8;
    # mean over the TRUE row count (padded rows contributed 0).
    return jnp.sum(partials) / jnp.float32(8 * n)


def _reference(pred, soft, temperature):
    pred = pred.astype(jnp.float32)
    soft = soft.astype(jnp.float32)
    log_p = jax.nn.log_softmax(pred / temperature, axis=1)
    q = jax.nn.softmax(soft / temperature, axis=1)
    return jnp.mean(jnp.sum(q * (jnp.log(q) - log_p), axis=-1))


if __name__ == "__main__":
    key = jax.random.PRNGKey(0)
    k_pred, k_soft = jax.random.split(key)

    # Small synthetic student/teacher logits: batch N=256, classes C=128.
    N, C = 256, 128
    pred = jax.random.normal(k_pred, (N, C), dtype=jnp.float32)
    soft = jax.random.normal(k_soft, (N, C), dtype=jnp.float32)

    # f32, auto tiling (4 grid steps) and an explicit tiling.
    ref = _reference(pred, soft, TEMPERATURE)
    loss_auto = criterion_kd(pred, soft, temperature=TEMPERATURE)
    loss_tiled = criterion_kd(pred, soft, temperature=TEMPERATURE, block_rows=32)

    # bf16 inputs (kernel upcasts internally) -> 2x HBM-bandwidth win.
    pred_bf = pred.astype(jnp.bfloat16)
    soft_bf = soft.astype(jnp.bfloat16)
    ref_bf = _reference(pred_bf, soft_bf, TEMPERATURE)
    loss_bf = criterion_kd(pred_bf, soft_bf, temperature=TEMPERATURE)

    # Ragged N (exercises wrapper-side padding).
    Nr = 250
    ref_r = _reference(pred[:Nr], soft[:Nr], TEMPERATURE)
    loss_r = criterion_kd(pred[:Nr], soft[:Nr], temperature=TEMPERATURE)

    jax.block_until_ready((loss_auto, loss_tiled, loss_bf, loss_r))

    assert jnp.allclose(loss_auto, ref, atol=1e-5, rtol=1e-5), (loss_auto, ref)
    assert jnp.allclose(loss_tiled, ref, atol=1e-5, rtol=1e-5), (loss_tiled, ref)
    assert jnp.allclose(loss_bf, ref_bf, atol=1e-4, rtol=1e-4), (loss_bf, ref_bf)
    assert jnp.allclose(loss_r, ref_r, atol=1e-5, rtol=1e-5), (loss_r, ref_r)
    print("KERNEL_OK")
</pallas_src>

<mosaic_0001>
module attributes {stable_mosaic.version = 11 : i64} {
  func.func @_kd_kernel(%arg0: i32, %arg1: memref<64x128xf32, #tpu.memory_space<vmem>>, %arg2: memref<64x128xf32, #tpu.memory_space<vmem>>, %arg3: memref<8x128xf32, #tpu.memory_space<vmem>>) attributes {dimension_semantics = [#tpu.dimension_semantics<parallel>], iteration_bounds = array<i64: 4>, scalar_prefetch = 0 : i64, scratch_operands = 0 : i64, tpu.core_type = #tpu.core_type<tc>, window_params = [{transform_indices = @transform_0, window_bounds = array<i64: 64, 128>}, {transform_indices = @transform_1, window_bounds = array<i64: 64, 128>}, {transform_indices = @transform_2, window_bounds = array<i64: 8, 128>}]} {
    %c0 = arith.constant 0 : index
    %c0_0 = arith.constant 0 : index
    %0 = vector.load %arg1[%c0, %c0_0] : memref<64x128xf32, #tpu.memory_space<vmem>>, vector<64x128xf32>
    %cst = arith.constant 1.000000e-01 : f32
    %1 = vector.broadcast %cst : f32 to vector<64x128xf32>
    %2 = arith.mulf %0, %1 : vector<64x128xf32>
    %c0_1 = arith.constant 0 : index
    %c0_2 = arith.constant 0 : index
    %3 = vector.load %arg2[%c0_1, %c0_2] : memref<64x128xf32, #tpu.memory_space<vmem>>, vector<64x128xf32>
    %cst_3 = arith.constant 1.000000e-01 : f32
    %4 = vector.broadcast %cst_3 : f32 to vector<64x128xf32>
    %5 = arith.mulf %3, %4 : vector<64x128xf32>
    %cst_4 = arith.constant dense<0xFF800000> : vector<64xf32>
    %6 = vector.multi_reduction <maximumf>, %2, %cst_4 [1] : vector<64x128xf32> to vector<64xf32>
    %7 = vector.shape_cast %6 : vector<64xf32> to vector<64x1xf32>
    %8 = vector.broadcast %7 : vector<64x1xf32> to vector<64x128xf32>
    %9 = arith.subf %2, %8 : vector<64x128xf32>
    %10 = math.exp %9 : vector<64x128xf32>
    %cst_5 = arith.constant dense<0.000000e+00> : vector<64xf32>
    %11 = vector.multi_reduction <add>, %10, %cst_5 [1] : vector<64x128xf32> to vector<64xf32>
    %12 = vector.shape_cast %11 : vector<64xf32> to vector<64x1xf32>
    %13 = math.log %12 : vector<64x1xf32>
    %14 = vector.broadcast %13 : vector<64x1xf32> to vector<64x128xf32>
    %15 = arith.subf %9, %14 : vector<64x128xf32>
    %cst_6 = arith.constant dense<0xFF800000> : vector<64xf32>
    %16 = vector.multi_reduction <maximumf>, %5, %cst_6 [1] : vector<64x128xf32> to vector<64xf32>
    %17 = vector.shape_cast %16 : vector<64xf32> to vector<64x1xf32>
    %18 = vector.broadcast %17 : vector<64x1xf32> to vector<64x128xf32>
    %19 = arith.subf %5, %18 : vector<64x128xf32>
    %20 = math.exp %19 : vector<64x128xf32>
    %cst_7 = arith.constant dense<0.000000e+00> : vector<64xf32>
    %21 = vector.multi_reduction <add>, %20, %cst_7 [1] : vector<64x128xf32> to vector<64xf32>
    %22 = vector.shape_cast %21 : vector<64xf32> to vector<64x1xf32>
    %cst_8 = arith.constant 1.000000e+00 : f32
    %23 = vector.broadcast %cst_8 : f32 to vector<64x1xf32>
    %24 = arith.divf %23, %22 : vector<64x1xf32>
    %25 = vector.broadcast %24 : vector<64x1xf32> to vector<64x128xf32>
    %26 = arith.mulf %20, %25 : vector<64x128xf32>
    %27 = math.log %22 : vector<64x1xf32>
    %28 = vector.broadcast %27 : vector<64x1xf32> to vector<64x128xf32>
    %29 = arith.subf %19, %28 : vector<64x128xf32>
    %30 = arith.subf %29, %15 : vector<64x128xf32>
    %31 = arith.mulf %26, %30 : vector<64x128xf32>
    %cst_9 = arith.constant dense<0.000000e+00> : vector<128xf32>
    %32 = vector.multi_reduction <add>, %31, %cst_9 [0] : vector<64x128xf32> to vector<128xf32>
    %33 = vector.shape_cast %32 : vector<128xf32> to vector<1x128xf32>
    %34 = vector.shape_cast %33 : vector<1x128xf32> to vector<1x128xf32>
    %35 = vector.broadcast %34 : vector<1x128xf32> to vector<8x128xf32>
    %c0_10 = arith.constant 0 : index
    %c0_11 = arith.constant 0 : index
    %36 = vector.load %arg3[%c0_10, %c0_11] : memref<8x128xf32, #tpu.memory_space<vmem>>, vector<8x128xf32>
    tpu.vector_store %arg3[%c0_10, %c0_11], %35 {strides = array<i32>} : memref<8x128xf32, #tpu.memory_space<vmem>>, vector<8x128xf32>,
    return
  }
  func.func @transform_0(%arg0: i32) -> (i32, i32) {
    %c0_i32 = arith.constant 0 : i32
    %c0_i32_0 = arith.constant 0 : i32
    return %arg0, %c0_i32 : i32, i32
  }
  func.func @transform_1(%arg0: i32) -> (i32, i32) {
    %c0_i32 = arith.constant 0 : i32
    %c0_i32_0 = arith.constant 0 : i32
    return %arg0, %c0_i32 : i32, i32
  }
  func.func @transform_2(%arg0: i32) -> (i32, i32) {
    %c0_i32 = arith.constant 0 : i32
    %c0_i32_0 = arith.constant 0 : i32
    return %arg0, %c0_i32 : i32, i32
  }
}

</mosaic_0001>

<llo_original>
// kernel: tpu_custom_call.1
$region0: #{tpu_custom_call.1}
  #allocation0 [shape = 'u32[]', space=smem, size = 0x4, offset = 0x4, fixed_abs, tag = 'smem constant byte address 0x4 - core index']
  #allocation1 [shape = 'u32[144,128]{1,0:T(1,128)}', space=vmem, size = 0x12000, scoped, tag = 'internal scratch']
  %s0 = inlined_call_operand.hbm [shape: f32[256,128], index: 0, kind: input, shape index: {}]
  %s1 = inlined_call_operand.hbm [shape: f32[256,128], index: 1, kind: input, shape index: {}]
  %s2 = inlined_call_operand.hbm [shape: f32[32,128], index: 2, kind: output, shape index: {}]
  %s3 = sld [smem:[#allocation0]]
  $region49: #{tpu_custom_call.1} parent=0
    _
  %s5 = ssub.s32 1, %s3
  %s6 = scalar_select 0, %s5, %s3
  $region1: #{tpu_custom_call.1} parent=0
    #allocation2 [shape = 'u8[65536]{0}', space=vmem, size = 0x10000, scoped, tag = 'input window, operand 0']
    #allocation3 [shape = 's32[2]{0}', space=sflag, size = 0x8, scoped, tag = 'scoped memory for tpu_custom_call.1']
    #allocation4 [shape = 's32[2]{0}', space=sflag, size = 0x8, scoped, tag = 'scoped memory for tpu_custom_call.1']
    #allocation5 [shape = 'u8[65536]{0}', space=vmem, size = 0x10000, scoped, tag = 'input window, operand 1']
    #allocation6 [shape = 's32[2]{0}', space=sflag, size = 0x8, scoped, tag = 'scoped memory for tpu_custom_call.1']
    #allocation7 [shape = 'u8[8192]{0}', space=vmem, size = 0x2000, scoped, tag = 'output window, operand 0']
    %7 = vsyncpa [#allocation3], 0
    %s8 = scalar_lea.sflag [#allocation3], 1
    %9 = vsyncpa %s8, 0
    %10 = vsyncpa [#allocation6], 0
    %s11 = scalar_lea.sflag [#allocation6], 1
    %12 = vsyncpa %s11, 0
    %13 = vsyncpa [#allocation4], 0
    %s14 = scalar_lea.sflag [#allocation4], 1
    %15 = vsyncpa %s14, 0
    loop: start=0, step=1, limit=6
    $region2: #{tpu_custom_call.1} parent=1 // loop_pre_header
      _
    $region3: #{tpu_custom_call.1} parent=1 // loop_header
      %s17 = sphi 0, %s21
      %p18 = scmp.ge.s32.totalorder %s17, 6
      %s27 = sphi 0, %s29
      %s30 = sphi 0, %s27
      %s31 = sphi 0, %s30
      %s47 = sphi 0, %s31
      %s53 = sphi 0, %s55
      %s56 = sphi 0, %s53
      %s57 = sphi 0, %s56
      %s73 = sphi 0, %s57
      %s79 = sphi 0, %s81
      %s82 = sphi 0, %s79
      %s83 = sphi 0, %s82
      %s99 = sphi 0, %s83
    $region4: #{tpu_custom_call.1} parent=1 // loop_header_branch
      %20 = sbr.rel (%p18) target = $region8
    $region5: #{tpu_custom_call.1} parent=1 // loop_body
      %s22 = ssub.s32 %s17, 1
      %s23 = ssub.s32 %s17, 2
      %s24 = sadd.s32 %s17, 1
      %s25 = ssub.s32 %s17, %s24
      %p26 = scmp.eq.s32.totalorder %s25, 0
      %s28 = sadd.s32 %s27, 1
      %s29 = scalar_select %p26, %s27, %s28
      %p32 = pneg %p26
      %p33 = scmp.eq.s32.totalorder %s17, 3
      %p34 = por %p32, %p33
      %p35 = scmp.ne.s32.totalorder %s27, %s30
      %p36 = scmp.eq.s32.totalorder %s17, 0
      %p37 = por %p35, %p36
      %p38 = scmp.ne.s32.totalorder %s27, %s30
      %p39 = scmp.eq.s32.totalorder %s22, 3
      %p40 = por %p38, %p39
      %p41 = scmp.ne.s32.totalorder %s30, %s31
      %p42 = scmp.eq.s32.totalorder %s22, 0
      %p43 = por %p41, %p42
      %p44 = scmp.ne.s32.totalorder %s30, %s31
      %p45 = scmp.eq.s32.totalorder %s23, 3
      %p46 = por %p44, %p45
      %p48 = scmp.ne.s32.totalorder %s31, %s47
      %p49 = scmp.eq.s32.totalorder %s23, 0
      %p50 = por %p48, %p49
      %s51 = ssub.s32 %s17, %s24
      %p52 = scmp.eq.s32.totalorder %s51, 0
      %s54 = sadd.s32 %s53, 1
      %s55 = scalar_select %p52, %s53, %s54
      %p58 = pneg %p52
      %p59 = scmp.eq.s32.totalorder %s17, 3
      %p60 = por %p58, %p59
      %p61 = scmp.ne.s32.totalorder %s53, %s56
      %p62 = scmp.eq.s32.totalorder %s17, 0
      %p63 = por %p61, %p62
      %p64 = scmp.ne.s32.totalorder %s53, %s56
      %p65 = scmp.eq.s32.totalorder %s22, 3
      %p66 = por %p64, %p65
      %p67 = scmp.ne.s32.totalorder %s56, %s57
      %p68 = scmp.eq.s32.totalorder %s22, 0
      %p69 = por %p67, %p68
      %p70 = scmp.ne.s32.totalorder %s56, %s57
      %p71 = scmp.eq.s32.totalorder %s23, 3
      %p72 = por %p70, %p71
      %p74 = scmp.ne.s32.totalorder %s57, %s73
      %p75 = scmp.eq.s32.totalorder %s23, 0
      %p76 = por %p74, %p75
      %s77 = ssub.s32 %s17, %s24
      %p78 = scmp.eq.s32.totalorder %s77, 0
      %s80 = sadd.s32 %s79, 1
      %s81 = scalar_select %p78, %s79, %s80
      %p84 = pneg %p78
      %p85 = scmp.eq.s32.totalorder %s17, 3
      %p86 = por %p84, %p85
      %p87 = scmp.ne.s32.totalorder %s79, %s82
      %p88 = scmp.eq.s32.totalorder %s17, 0
      %p89 = por %p87, %p88
      %p90 = scmp.ne.s32.totalorder %s79, %s82
      %p91 = scmp.eq.s32.totalorder %s22, 3
      %p92 = por %p90, %p91
      %p93 = scmp.ne.s32.totalorder %s82, %s83
      %p94 = scmp.eq.s32.totalorder %s22, 0
      %p95 = por %p93, %p94
      %p96 = scmp.ne.s32.totalorder %s82, %s83
      %p97 = scmp.eq.s32.totalorder %s23, 3
      %p98 = por %p96, %p97
      %p100 = scmp.ne.s32.totalorder %s83, %s99
      %p101 = scmp.eq.s32.totalorder %s23, 0
      %p102 = por %p100, %p101
      %p103 = scmp.le.s32.totalorder 1, %s17
      %p104 = scmp.lt.s32.totalorder %s17, 5
      %p105 = pnand %p103, %p104
      %p106 = pneg %p105
      // Predicated region
      $region9: #{tpu_custom_call.1} parent=5 // pred_check
        _
      $region10: #{tpu_custom_call.1} parent=5 // pred_check_branch
        %108 = sbr.rel (%p105) target = $region12
      $region11: #{tpu_custom_call.1} parent=5 // pred_region
        %s109 = ssub.s32 %s17, 1
      $region12: #{tpu_custom_call.1} parent=5 // pred_fallthru
        _
      %p110 = scmp.lt.s32.totalorder %s17, 4
      // Predicated region
      $region13: #{tpu_custom_call.1} parent=5 // pred_check
        %p111 = pneg %p110
      $region14: #{tpu_custom_call.1} parent=5 // pred_check_branch
        %113 = sbr.rel (%p111) target = $region16
      $region15: #{tpu_custom_call.1} parent=5 // pred_region
        // Predicated region
        $region17: #{tpu_custom_call.1} parent=15 // pred_check
          %p114 = pneg %p37
        $region18: #{tpu_custom_call.1} parent=15 // pred_check_branch
          %116 = sbr.rel (%p114) target = $region20
        $region19: #{tpu_custom_call.1} parent=15 // pred_region
          %s117 = sand.u32 %s27, 1
          %s118 = scalar_lea.sflag [#allocation3], %s117
          %s119 = sand.u32 %s27, 1
          %s120 = smul.addr %s119, 64
          %s121 = scalar_lea.vmem [#allocation2], %s120
          %s122 = smul.u32 8, %s17
          %s124 = ssub.s32 1024, 1024
          %125 = vsyncadd %s118, %s124
          %s126 = smul.addr %s122, 128
          %s127 = scalar_lea.hbm %s0, %s126
          %s128 = sshll.u32 %s121, 4
          %s129 = int_to_ptr.vmem [resolvable:$true] %s128
          %134 = dma.hbm_to_vmem [thread:$0]  %s127, 1024, %s129, %s118, 128, 128, 8
        $region20: #{tpu_custom_call.1} parent=15 // pred_fallthru
          _
        // Predicated region
        $region21: #{tpu_custom_call.1} parent=15 // pred_check
          %p135 = pneg %p63
        $region22: #{tpu_custom_call.1} parent=15 // pred_check_branch
          %137 = sbr.rel (%p135) target = $region24
        $region23: #{tpu_custom_call.1} parent=15 // pred_region
          %s138 = sand.u32 %s53, 1
          %s139 = scalar_lea.sflag [#allocation6], %s138
          %s140 = sand.u32 %s53, 1
          %s141 = smul.addr %s140, 64
          %s142 = scalar_lea.vmem [#allocation5], %s141
          %s143 = smul.u32 8, %s17
          %s145 = ssub.s32 1024, 1024
          %146 = vsyncadd %s139, %s145
          %s147 = smul.addr %s143, 128
          %s148 = scalar_lea.hbm %s1, %s147
          %s149 = sshll.u32 %s142, 4
          %s150 = int_to_ptr.vmem [resolvable:$true] %s149
          %155 = dma.hbm_to_vmem [thread:$0]  %s148, 1024, %s150, %s139, 128, 128, 8
        $region24: #{tpu_custom_call.1} parent=15 // pred_fallthru
          _
      $region16: #{tpu_custom_call.1} parent=5 // pred_fallthru
        _
      %p156 = scmp.le.s32.totalorder 1, %s17
      %p157 = scmp.lt.s32.totalorder %s17, 5
      %p158 = pnand %p156, %p157
      %p159 = pneg %p158
      // Predicated region
      $region25: #{tpu_custom_call.1} parent=5 // pred_check
        _
      $region26: #{tpu_custom_call.1} parent=5 // pred_check_branch
        %161 = sbr.rel (%p158) target = $region28
      $region27: #{tpu_custom_call.1} parent=5 // pred_region
        %s162 = ssub.s32 %s17, 1
        %s163 = sand.u32 %s30, 1
        %s164 = scalar_lea.sflag [#allocation3], %s163
        %s165 = sand.u32 %s30, 1
        %s166 = smul.addr %s165, 64
        %s167 = scalar_lea.vmem [#allocation2], %s166
        // Predicated region
        $region29: #{tpu_custom_call.1} parent=27 // pred_check
          %p168 = pneg %p43
        $region30: #{tpu_custom_call.1} parent=27 // pred_check_branch
          %170 = sbr.rel (%p168) target = $region32
        $region31: #{tpu_custom_call.1} parent=27 // pred_region
          %171 = dma.done %s164, 1024
        $region32: #{tpu_custom_call.1} parent=27 // pred_fallthru
          _
        %s172 = sand.u32 %s56, 1
        %s173 = scalar_lea.sflag [#allocation6], %s172
        %s174 = sand.u32 %s56, 1
        %s175 = smul.addr %s174, 64
        %s176 = scalar_lea.vmem [#allocation5], %s175
        // Predicated region
        $region33: #{tpu_custom_call.1} parent=27 // pred_check
          %p177 = pneg %p69
        $region34: #{tpu_custom_call.1} parent=27 // pred_check_branch
          %179 = sbr.rel (%p177) target = $region36
        $region35: #{tpu_custom_call.1} parent=27 // pred_region
          %180 = dma.done %s173, 1024
        $region36: #{tpu_custom_call.1} parent=27 // pred_fallthru
          _
        %s181 = sand.u32 %s30, 1
        %s182 = scalar_lea.sflag [#allocation3], %s181
        %s183 = sand.u32 %s30, 1
        %s184 = smul.addr %s183, 64
        %s185 = scalar_lea.vmem [#allocation2], %s184
        %p186 = pneg %p43
        %p187 = pneg %p40
        %s188 = sand.u32 %s56, 1
        %s189 = scalar_lea.sflag [#allocation6], %s188
        %s190 = sand.u32 %s56, 1
        %s191 = smul.addr %s190, 64
        %s192 = scalar_lea.vmem [#allocation5], %s191
        %p193 = pneg %p69
        %p194 = pneg %p66
        %p195 = pneg %p95
        %p196 = pneg %p92
        %s197 = sand.u32 %s82, 1
        %s198 = scalar_lea.sflag [#allocation4], %s197
        %s199 = sand.u32 %s82, 1
        %s200 = smul.addr %s199, 8
        %s201 = scalar_lea.vmem [#allocation7], %s200
        %s202 = smul.u32 8, %s22
        %s203 = smul.u32 8, %s22
        %v204 = vld [vmem:[%s167] sm:$0xff]
        %v205 = vld [vmem:[%s167 + $0x8] sm:$0xff]
        %v206 = vld [vmem:[%s167 + $0x10] sm:$0xff]
        %v207 = vld [vmem:[%s167 + $0x18] sm:$0xff]
        %v208 = vld [vmem:[%s167 + $0x20] sm:$0xff]
        %v209 = vld [vmem:[%s167 + $0x28] sm:$0xff]
        %v210 = vld [vmem:[%s167 + $0x30] sm:$0xff]
        %v211 = vld [vmem:[%s167 + $0x38] sm:$0xff]
        %v212 = vmul.f32 %v204, 0.1
        %v213 = vmul.f32 %v205, 0.1
        %v214 = vmul.f32 %v206, 0.1
        %v215 = vmul.f32 %v207, 0.1
        %v216 = vmul.f32 %v208, 0.1
        %v217 = vmul.f32 %v209, 0.1
        %v218 = vmul.f32 %v210, 0.1
        %v219 = vmul.f32 %v211, 0.1
        %v220 = vld [vmem:[%s176] sm:$0xff]
        %v221 = vld [vmem:[%s176 + $0x8] sm:$0xff]
        %v222 = vld [vmem:[%s176 + $0x10] sm:$0xff]
        %v223 = vld [vmem:[%s176 + $0x18] sm:$0xff]
        %v224 = vld [vmem:[%s176 + $0x20] sm:$0xff]
        %v225 = vld [vmem:[%s176 + $0x28] sm:$0xff]
        %v226 = vld [vmem:[%s176 + $0x30] sm:$0xff]
        %v227 = vld [vmem:[%s176 + $0x38] sm:$0xff]
        %v228 = vmul.f32 %v220, 0.1
        %v229 = vmul.f32 %v221, 0.1
        %v230 = vmul.f32 %v222, 0.1
        %v231 = vmul.f32 %v223, 0.1
        %v232 = vmul.f32 %v224, 0.1
        %v233 = vmul.f32 %v225, 0.1
        %v234 = vmul.f32 %v226, 0.1
        %v235 = vmul.f32 %v227, 0.1
        %236 = vmax.xlane.f32.xlu0 %v212
        %v237 = vpop.xlane.xlu0 %236
        %238 = vmax.xlane.f32.xlu0 %v213
        %v239 = vpop.xlane.xlu0 %238
        %240 = vmax.xlane.f32.xlu0 %v214
        %v241 = vpop.xlane.xlu0 %240
        %242 = vmax.xlane.f32.xlu0 %v215
        %v243 = vpop.xlane.xlu0 %242
        %244 = vmax.xlane.f32.xlu0 %v216
        %v245 = vpop.xlane.xlu0 %244
        %246 = vmax.xlane.f32.xlu0 %v217
        %v247 = vpop.xlane.xlu0 %246
        %248 = vmax.xlane.f32.xlu0 %v218
        %v249 = vpop.xlane.xlu0 %248
        %250 = vmax.xlane.f32.xlu0 %v219
        %v251 = vpop.xlane.xlu0 %250
        %v252 = vsub.f32 %v212, %v237
        %v253 = vsub.f32 %v213, %v239
        %v254 = vsub.f32 %v214, %v241
        %v255 = vsub.f32 %v215, %v243
        %v256 = vsub.f32 %v216, %v245
        %v257 = vsub.f32 %v217, %v247
        %v258 = vsub.f32 %v218, %v249
        %v259 = vsub.f32 %v219, %v251
        %v260 = vmul.f32 %v252, 1.442695
        %v261 = vpow.pop %v260
        %v262 = vmul.f32 %v253, 1.442695
        %v263 = vpow.pop %v262
        %v264 = vmul.f32 %v254, 1.442695
        %v265 = vpow.pop %v264
        %v266 = vmul.f32 %v255, 1.442695
        %v267 = vpow.pop %v266
        %v268 = vmul.f32 %v256, 1.442695
        %v269 = vpow.pop %v268
        %v270 = vmul.f32 %v257, 1.442695
        %v271 = vpow.pop %v270
        %v272 = vmul.f32 %v258, 1.442695
        %v273 = vpow.pop %v272
        %v274 = vmul.f32 %v259, 1.442695
        %v275 = vpow.pop %v274
        %276 = vadd.xlane.f32.xlu0 %v261
        %v277 = vpop.xlane.xlu0 %276
        %278 = vadd.xlane.f32.xlu0 %v263
        %v279 = vpop.xlane.xlu0 %278
        %280 = vadd.xlane.f32.xlu0 %v265
        %v281 = vpop.xlane.xlu0 %280
        %282 = vadd.xlane.f32.xlu0 %v267
        %v283 = vpop.xlane.xlu0 %282
        %284 = vadd.xlane.f32.xlu0 %v269
        %v285 = vpop.xlane.xlu0 %284
        %286 = vadd.xlane.f32.xlu0 %v271
        %v287 = vpop.xlane.xlu0 %286
        %288 = vadd.xlane.f32.xlu0 %v273
        %v289 = vpop.xlane.xlu0 %288
        %290 = vadd.xlane.f32.xlu0 %v275
        %v291 = vpop.xlane.xlu0 %290
        %v292 = vlog2.pop %v277
        %v293 = vmul.f32 %v292, 0.6931472
        %v294 = vlog2.pop %v279
        %v295 = vmul.f32 %v294, 0.6931472
        %v296 = vlog2.pop %v281
        %v297 = vmul.f32 %v296, 0.6931472
        %v298 = vlog2.pop %v283
        %v299 = vmul.f32 %v298, 0.6931472
        %v300 = vlog2.pop %v285
        %v301 = vmul.f32 %v300, 0.6931472
        %v302 = vlog2.pop %v287
        %v303 = vmul.f32 %v302, 0.6931472
        %v304 = vlog2.pop %v289
        %v305 = vmul.f32 %v304, 0.6931472
        %v306 = vlog2.pop %v291
        %v307 = vmul.f32 %v306, 0.6931472
        %v308 = vsub.f32 %v252, %v293
        %v309 = vsub.f32 %v253, %v295
        %v310 = vsub.f32 %v254, %v297
        %v311 = vsub.f32 %v255, %v299
        %v312 = vsub.f32 %v256, %v301
        %v313 = vsub.f32 %v257, %v303
        %v314 = vsub.f32 %v258, %v305
        %v315 = vsub.f32 %v259, %v307
        %316 = vmax.xlane.f32.xlu0 %v228
        %v317 = vpop.xlane.xlu0 %316
        %318 = vmax.xlane.f32.xlu0 %v229
        %v319 = vpop.xlane.xlu0 %318
        %320 = vmax.xlane.f32.xlu0 %v230
        %v321 = vpop.xlane.xlu0 %320
        %322 = vmax.xlane.f32.xlu0 %v231
        %v323 = vpop.xlane.xlu0 %322
        %324 = vmax.xlane.f32.xlu0 %v232
        %v325 = vpop.xlane.xlu0 %324
        %326 = vmax.xlane.f32.xlu0 %v233
        %v327 = vpop.xlane.xlu0 %326
        %328 = vmax.xlane.f32.xlu0 %v234
        %v329 = vpop.xlane.xlu0 %328
        %330 = vmax.xlane.f32.xlu0 %v235
        %v331 = vpop.xlane.xlu0 %330
        %v332 = vsub.f32 %v228, %v317
        %v333 = vsub.f32 %v229, %v319
        %v334 = vsub.f32 %v230, %v321
        %v335 = vsub.f32 %v231, %v323
        %v336 = vsub.f32 %v232, %v325
        %v337 = vsub.f32 %v233, %v327
        %v338 = vsub.f32 %v234, %v329
        %v339 = vsub.f32 %v235, %v331
        %v340 = vmul.f32 %v332, 1.442695
        %v341 = vpow.pop %v340
        %v342 = vmul.f32 %v333, 1.442695
        %v343 = vpow.pop %v342
        %v344 = vmul.f32 %v334, 1.442695
        %v345 = vpow.pop %v344
        %v346 = vmul.f32 %v335, 1.442695
        %v347 = vpow.pop %v346
        %v348 = vmul.f32 %v336, 1.442695
        %v349 = vpow.pop %v348
        %v350 = vmul.f32 %v337, 1.442695
        %v351 = vpow.pop %v350
        %v352 = vmul.f32 %v338, 1.442695
        %v353 = vpow.pop %v352
        %v354 = vmul.f32 %v339, 1.442695
        %v355 = vpow.pop %v354
        %356 = vadd.xlane.f32.xlu0 %v341
        %v357 = vpop.xlane.xlu0 %356
        %358 = vadd.xlane.f32.xlu0 %v343
        %v359 = vpop.xlane.xlu0 %358
        %360 = vadd.xlane.f32.xlu0 %v345
        %v361 = vpop.xlane.xlu0 %360
        %362 = vadd.xlane.f32.xlu0 %v347
        %v363 = vpop.xlane.xlu0 %362
        %364 = vadd.xlane.f32.xlu0 %v349
        %v365 = vpop.xlane.xlu0 %364
        %366 = vadd.xlane.f32.xlu0 %v351
        %v367 = vpop.xlane.xlu0 %366
        %368 = vadd.xlane.f32.xlu0 %v353
        %v369 = vpop.xlane.xlu0 %368
        %370 = vadd.xlane.f32.xlu0 %v355
        %v371 = vpop.xlane.xlu0 %370
        %v372 = vrcp.pop %v357
        %v373 = vmul.f32 1.0, %v372
        %v374 = vrcp.pop %v359
        %v375 = vmul.f32 1.0, %v374
        %v376 = vrcp.pop %v361
        %v377 = vmul.f32 1.0, %v376
        %v378 = vrcp.pop %v363
        %v379 = vmul.f32 1.0, %v378
        %v380 = vrcp.pop %v365
        %v381 = vmul.f32 1.0, %v380
        %v382 = vrcp.pop %v367
        %v383 = vmul.f32 1.0, %v382
        %v384 = vrcp.pop %v369
        %v385 = vmul.f32 1.0, %v384
        %v386 = vrcp.pop %v371
        %v387 = vmul.f32 1.0, %v386
        %v388 = vmul.f32 %v341, %v373
        %v389 = vmul.f32 %v343, %v375
        %v390 = vmul.f32 %v345, %v377
        %v391 = vmul.f32 %v347, %v379
        %v392 = vmul.f32 %v349, %v381
        %v393 = vmul.f32 %v351, %v383
        %v394 = vmul.f32 %v353, %v385
        %v395 = vmul.f32 %v355, %v387
        %v396 = vlog2.pop %v357
        %v397 = vmul.f32 %v396, 0.6931472
        %v398 = vlog2.pop %v359
        %v399 = vmul.f32 %v398, 0.6931472
        %v400 = vlog2.pop %v361
        %v401 = vmul.f32 %v400, 0.6931472
        %v402 = vlog2.pop %v363
        %v403 = vmul.f32 %v402, 0.6931472
        %v404 = vlog2.pop %v365
        %v405 = vmul.f32 %v404, 0.6931472
        %v406 = vlog2.pop %v367
        %v407 = vmul.f32 %v406, 0.6931472
        %v408 = vlog2.pop %v369
        %v409 = vmul.f32 %v408, 0.6931472
        %v410 = vlog2.pop %v371
        %v411 = vmul.f32 %v410, 0.6931472
        %v412 = vsub.f32 %v332, %v397
        %v413 = vsub.f32 %v333, %v399
        %v414 = vsub.f32 %v334, %v401
        %v415 = vsub.f32 %v335, %v403
        %v416 = vsub.f32 %v336, %v405
        %v417 = vsub.f32 %v337, %v407
        %v418 = vsub.f32 %v338, %v409
        %v419 = vsub.f32 %v339, %v411
        %v420 = vsub.f32 %v412, %v308
        %v421 = vsub.f32 %v413, %v309
        %v422 = vsub.f32 %v414, %v310
        %v423 = vsub.f32 %v415, %v311
        %v424 = vsub.f32 %v416, %v312
        %v425 = vsub.f32 %v417, %v313
        %v426 = vsub.f32 %v418, %v314
        %v427 = vsub.f32 %v419, %v315
        %v428 = vmul.f32 %v388, %v420
        %v429 = vmul.f32 %v389, %v421
        %v430 = vmul.f32 %v390, %v422
        %v431 = vmul.f32 %v391, %v423
        %v432 = vmul.f32 %v392, %v424
        %v433 = vmul.f32 %v393, %v425
        %v434 = vmul.f32 %v394, %v426
        %v435 = vmul.f32 %v395, %v427
        %v436 = vadd.f32 %v428, %v429
        %v437 = vadd.f32 %v436, %v430
        %v438 = vadd.f32 %v437, %v431
        %v439 = vadd.f32 %v438, %v432
        %v440 = vadd.f32 %v439, %v433
        %v441 = vadd.f32 %v440, %v434
        %v442 = vadd.f32 %v441, %v435
        %v443 = vrot.slane %v442, 4
        %v444 = vadd.f32 %v442, %v443
        %v445 = vrot.slane %v444, 2
        %v446 = vadd.f32 %v444, %v445
        %v447 = vrot.slane %v446, 1
        %v448 = vadd.f32 %v446, %v447
        %449 = vst [vmem:[%s201] sm:$0xff] %v448
        %s450 = sand.u32 %s82, 1
        %s451 = scalar_lea.sflag [#allocation4], %s450
        %s452 = sand.u32 %s82, 1
        %s453 = smul.addr %s452, 8
        %s454 = scalar_lea.vmem [#allocation7], %s453
        // Predicated region
        $region37: #{tpu_custom_call.1} parent=27 // pred_check
          %p455 = pneg %p92
        $region38: #{tpu_custom_call.1} parent=27 // pred_check_branch
          %457 = sbr.rel (%p455) target = $region40
        $region39: #{tpu_custom_call.1} parent=27 // pred_region
          %s459 = ssub.s32 128, 128
          %460 = vsyncadd %s451, %s459
          %s461 = smul.addr %s22, 128
          %s462 = scalar_lea.hbm %s2, %s461
          %s464 = sshll.u32 %s454, 4
          %s465 = int_to_ptr.vmem [resolvable:$true] %s464
          %467 = dma.vmem_to_hbm [thread:$0]  %s465, 128, %s462, %s451
        $region40: #{tpu_custom_call.1} parent=27 // pred_fallthru
          _
      $region28: #{tpu_custom_call.1} parent=5 // pred_fallthru
        _
      %p468 = scmp.le.s32.totalorder 2, %s17
      // Predicated region
      $region41: #{tpu_custom_call.1} parent=5 // pred_check
        %p469 = pneg %p468
      $region42: #{tpu_custom_call.1} parent=5 // pred_check_branch
        %471 = sbr.rel (%p469) target = $region44
      $region43: #{tpu_custom_call.1} parent=5 // pred_region
        %s472 = ssub.s32 %s17, 2
        // Predicated region
        $region45: #{tpu_custom_call.1} parent=43 // pred_check
          %p473 = pneg %p98
        $region46: #{tpu_custom_call.1} parent=43 // pred_check_branch
          %475 = sbr.rel (%p473) target = $region48
        $region47: #{tpu_custom_call.1} parent=43 // pred_region
          %s476 = sand.u32 %s83, 1
          %s477 = scalar_lea.sflag [#allocation4], %s476
          %s478 = sand.u32 %s83, 1
          %s479 = smul.addr %s478, 8
          %s480 = scalar_lea.vmem [#allocation7], %s479
          %481 = dma.done %s477, 128
        $region48: #{tpu_custom_call.1} parent=43 // pred_fallthru
          _
      $region44: #{tpu_custom_call.1} parent=5 // pred_fallthru
        _
    $region6: #{tpu_custom_call.1} parent=1 // loop_footer
      %s21 = sadd.s32 1, %s17
    $region7: #{tpu_custom_call.1} parent=1 // loop_footer_branch
      %16 = sbr.rel target = $region3
    $region8: #{tpu_custom_call.1} parent=1 // loop_exit
      _
    %482 = vsyncpa [#allocation3], 1
    %s483 = scalar_lea.sflag [#allocation3], 1
    %484 = vsyncpa %s483, 1
    %485 = vsyncpa [#allocation6], 1
    %s486 = scalar_lea.sflag [#allocation6], 1
    %487 = vsyncpa %s486, 1
    %488 = vsyncpa [#allocation4], 1
    %s489 = scalar_lea.sflag [#allocation4], 1
    %490 = vsyncpa %s489, 1

</llo_original>
